<compile_context>
chip_gen: v5e
topology: v5e:2x2
jax: 0.10.0
libtpu: 0.0.40
codegen_flags: <defaults>
</compile_context>

<pallas_src>
import functools

import jax
import jax.numpy as jnp
from jax.experimental import pallas as pl
from jax.experimental.pallas import tpu as pltpu

LANE = 128      # lane width / MXU-friendly last-dim multiple
SUBLANE = 8     # f32 sublane count


def _round_up(x: int, m: int) -> int:
    return pl.cdiv(x, m) * m


def _vmem_capacity_bytes() -> int:
    """Physical VMEM per TensorCore (generation-aware cap for vmem_limit_bytes)."""
    try:
        return int(pltpu.get_tpu_info().vmem_capacity_bytes)
    except Exception:
        return 64 << 20   # conservative fallback = v7x per-TC VMEM


def _fused_mlp_kernel(*refs, n_layers: int, has_bias: bool, compute_dtype, n_splits: int):
    """Fused MLP on one (tile_m, *) row tile: o = L_n(tanh(...tanh(L_1(x))...)).

    refs = (x_ref, [w_0, (b_0), w_1, (b_1), ...], o_ref)
    Matmuls accumulate in f32 on the MXU; bias add + tanh run in f32 (VPU/EUP).
    The row tile is split into `n_splits` independent sub-chains emitted in one basic
    block so the scheduler can overlap one chain's activation work with the other's
    matmuls.  Hidden activations are kept as values (no scratch round-trip).
    """
    per = 2 if has_bias else 1
    x_ref = refs[0]
    layer_refs = refs[1:1 + per * n_layers]
    o_ref = refs[1 + per * n_layers]

    tile_m = x_ref.shape[0]
    sub_m = tile_m // n_splits
    for s in range(n_splits):                          # static unroll: independent chains
        rows = pl.ds(s * sub_m, sub_m)
        h = x_ref[rows, :].astype(compute_dtype)
        for i in range(n_layers):
            w = layer_refs[per * i][...].astype(compute_dtype)
            y = jnp.dot(h, w, preferred_element_type=jnp.float32)
            if has_bias:
                y = y + layer_refs[per * i + 1][...]   # (1, N) f32 broadcast over rows
            if i < n_layers - 1:
                h = jnp.tanh(y).astype(compute_dtype)  # f32 tanh on EUP, cast for MXU
            else:
                o_ref[rows, :] = y.astype(o_ref.dtype)  # lane-dense store (N % 128 == 0)


def fused_mlp_forward(x_pad, padded_params, *, has_bias: bool, tile_m: int, n_splits: int,
                      compute_dtype, out_dtype, single_buffer_weights: bool = True):
    """x_pad: (M_pad, K0) with M_pad % tile_m == 0; K0 is either the raw in_features
    (when <= 128) or padded to a multiple of 128.  padded_params: list of
    (w (K, N_pad) in compute_dtype, b (1, N_pad) f32 or None), N_pad % 128 == 0.
    Returns (M_pad, N_last_pad); caller slices off padding."""
    M, K0 = x_pad.shape
    assert M % tile_m == 0 and tile_m % n_splits == 0
    n_layers = len(padded_params)
    N_last = padded_params[-1][0].shape[1]

    def _const_spec(shape):
        # Grid-invariant block (constant index_map): single-buffer so only ONE VMEM copy
        # of each weight/bias is resident (they dominate VMEM; matters on v7x's 64 MiB).
        if single_buffer_weights:
            return pl.BlockSpec(shape, lambda i: (0, 0), pipeline_mode=pl.Buffered(1))
        return pl.BlockSpec(shape, lambda i: (0, 0))

    inputs = [x_pad]
    in_specs = [pl.BlockSpec((tile_m, K0), lambda i: (i, 0))]
    resident_bytes = 0
    for w, b in padded_params:
        Kw, Nw = w.shape
        inputs.append(w)
        in_specs.append(_const_spec((Kw, Nw)))
        resident_bytes += w.size * w.dtype.itemsize
        if has_bias:
            inputs.append(b)
            in_specs.append(_const_spec((1, Nw)))
            resident_bytes += b.size * b.dtype.itemsize
    if not single_buffer_weights:
        resident_bytes *= 2

    # VMEM budget: double-buffered x/out row tiles + resident weights/biases + in-kernel
    # activation temporaries (f32 y + compute_dtype h) of the widest layer.
    max_n = max(w.shape[1] for w, _ in padded_params)
    est = 2 * tile_m * K0 * x_pad.dtype.itemsize
    est += 2 * tile_m * N_last * jnp.dtype(out_dtype).itemsize
    est += resident_bytes
    est += tile_m * max_n * (4 + jnp.dtype(compute_dtype).itemsize)

    # Always set an explicit, generation-aware limit: the scoped default is only 16 MiB on
    # v5e / 32 MiB on v6e+, and it must never exceed physical VMEM (64 MiB/TC on v7x).
    cap = _vmem_capacity_bytes()
    cap = max(cap - (16 << 20), cap // 2)              # leave headroom for Mosaic scratch
    vmem_limit = int(min(max(est * 3 // 2, 32 << 20), cap))
    # TODO(synk): add an N-blocking second grid axis (or per-layer emit_pipeline) fallback
    # for weight sets larger than ~3/4 of VMEM instead of holding every layer resident.

    kernel = functools.partial(_fused_mlp_kernel, n_layers=n_layers, has_bias=has_bias,
                               compute_dtype=compute_dtype, n_splits=n_splits)
    return pl.pallas_call(
        kernel,
        out_shape=jax.ShapeDtypeStruct((M, N_last), out_dtype),
        grid=(M // tile_m,),
        in_specs=in_specs,
        out_specs=pl.BlockSpec((tile_m, N_last), lambda i: (i, 0)),
        compiler_params=pltpu.CompilerParams(
            dimension_semantics=("parallel",),          # shard row tiles across v7x's 2 TCs
            vmem_limit_bytes=vmem_limit),
    )(*inputs)


class MLPPallas:
    """JAX/Pallas port of the PyTorch MLP: Linear layers with Tanh between every pair of
    consecutive Linears except after the last one.  The whole forward is one fused
    pallas_call.  compute_dtype=bfloat16 by default (MXU operands only); accumulation,
    bias add and tanh stay in f32."""

    def __init__(self, sizes, bias=True, key=None, dtype=jnp.float32,
                 compute_dtype=jnp.bfloat16, tile_m=512):
        if key is None:
            key = jax.random.PRNGKey(0)
        self.sizes = tuple(sizes)
        self.bias = bool(bias)
        self.dtype = dtype
        self.compute_dtype = compute_dtype
        self.tile_m = int(tile_m)

        # First-layer K: keep unpadded when it already fits one MXU pass (<= 128); a
        # full-array-dim block is legal and this cuts x DMA bytes 4x for small inputs.
        self._in_pad = sizes[0] if sizes[0] <= LANE else _round_up(sizes[0], LANE)
        self._out_dim = sizes[-1]

        self.params = []          # unpadded (w, b) in storage dtype (reference math)
        self._padded_params = []  # kernel params: W (K, N_pad) compute_dtype, b (1, N_pad) f32
        for i in range(len(sizes) - 1):
            key, wk, bk = jax.random.split(key, 3)
            fan_in, fan_out = sizes[i], sizes[i + 1]
            bound = 1.0 / float(fan_in) ** 0.5      # torch nn.Linear default init bound
            w = jax.random.uniform(wk, (fan_in, fan_out), dtype, -bound, bound)
            b = (jax.random.uniform(bk, (1, fan_out), dtype, -bound, bound)
                 if self.bias else None)
            self.params.append((w, b))

            k_pad = self._in_pad if i == 0 else _round_up(fan_in, LANE)
            n_pad = _round_up(fan_out, LANE)
            w_pad = jnp.zeros((k_pad, n_pad), compute_dtype).at[:fan_in, :fan_out].set(
                w.astype(compute_dtype))
            b_pad = None
            if self.bias:
                b_pad = jnp.zeros((1, n_pad), jnp.float32).at[:, :fan_out].set(
                    b.astype(jnp.float32))
            self._padded_params.append((w_pad, b_pad))

    def _plan_m(self, M):
        m8 = _round_up(M, SUBLANE)
        tile_m = min(self.tile_m, m8)
        if m8 > SUBLANE:
            # Keep >= 2 grid steps so the "parallel" M axis feeds both v7x TensorCores.
            tile_m = min(tile_m, pl.cdiv(m8, 2))
        step = 16 if tile_m > SUBLANE else SUBLANE
        tile_m = _round_up(max(tile_m, SUBLANE), step)
        m_pad = _round_up(M, tile_m)
        n_splits = 2 if (tile_m >= 16 and tile_m % 16 == 0) else 1
        return tile_m, m_pad, n_splits

    def __call__(self, x):
        M, K = x.shape
        assert K == self.sizes[0]
        tile_m, m_pad, n_splits = self._plan_m(M)
        x = x.astype(self.compute_dtype)     # half-width activation DMA when bf16
        if (m_pad, self._in_pad) != (M, K):
            x = jnp.pad(x, ((0, m_pad - M), (0, self._in_pad - K)))
        kwargs = dict(has_bias=self.bias, tile_m=tile_m, n_splits=n_splits,
                      compute_dtype=self.compute_dtype, out_dtype=self.dtype)
        try:
            out = fused_mlp_forward(x, self._padded_params,
                                    single_buffer_weights=True, **kwargs)
        except Exception:
            # Fallback if this toolchain rejects pl.Buffered(1) single-buffering.
            out = fused_mlp_forward(x, self._padded_params,
                                    single_buffer_weights=False, **kwargs)
        return out[:M, :self._out_dim]


def _reference_mlp(x, params):
    n = len(params)
    for i, (w, b) in enumerate(params):
        x = x @ w
        if b is not None:
            x = x + b
        if i < n - 1:
            x = jnp.tanh(x)
    return x


if __name__ == "__main__":
    key = jax.random.PRNGKey(0)
    key, xk = jax.random.split(key)

    batch = 256                  # -> two 128-row "parallel" tiles (both v7x TCs busy)
    sizes = (32, 64, 16)         # prefix-MLP style: in -> hidden -> out
    x = jax.random.normal(xk, (batch, sizes[0]), jnp.float32)

    # 1) f32 compute path: tight check against the pure-JAX reference.
    mlp_f32 = MLPPallas(sizes, bias=True, key=jax.random.PRNGKey(1),
                        compute_dtype=jnp.float32)
    out_f32 = jax.block_until_ready(mlp_f32(x))
    ref_f32 = _reference_mlp(x, mlp_f32.params)
    assert out_f32.shape == (batch, sizes[-1])
    assert jnp.allclose(out_f32, ref_f32, atol=1e-4, rtol=1e-4), \
        float(jnp.max(jnp.abs(out_f32 - ref_f32)))

    # Ragged small batch exercises row padding + the single-tile path.
    x_small = jax.random.normal(jax.random.PRNGKey(2), (5, sizes[0]), jnp.float32)
    out_small = jax.block_until_ready(mlp_f32(x_small))
    ref_small = _reference_mlp(x_small, mlp_f32.params)
    assert jnp.allclose(out_small, ref_small, atol=1e-4, rtol=1e-4)

    # 2) Default path: bf16 MXU operands, f32 accumulate/bias/tanh (looser tolerance).
    mlp_bf16 = MLPPallas(sizes, bias=True, key=jax.random.PRNGKey(1))
    out_bf16 = jax.block_until_ready(mlp_bf16(x))
    ref_bf16 = _reference_mlp(x, mlp_bf16.params)
    assert out_bf16.shape == (batch, sizes[-1])
    assert jnp.allclose(out_bf16, ref_bf16, atol=5e-2, rtol=5e-2), \
        float(jnp.max(jnp.abs(out_bf16 - ref_bf16)))

    print("KERNEL_OK")
</pallas_src>

<mosaic_0001>
module attributes {stable_mosaic.version = 11 : i64} {
  func.func @_fused_mlp_kernel(%arg0: i32, %arg1: memref<128x32xf32, #tpu.memory_space<vmem>>, %arg2: memref<32x128xf32, #tpu.memory_space<vmem>>, %arg3: memref<1x128xf32, #tpu.memory_space<vmem>>, %arg4: memref<128x128xf32, #tpu.memory_space<vmem>>, %arg5: memref<1x128xf32, #tpu.memory_space<vmem>>, %arg6: memref<128x128xf32, #tpu.memory_space<vmem>>) attributes {dimension_semantics = [#tpu.dimension_semantics<parallel>], iteration_bounds = array<i64: 2>, scalar_prefetch = 0 : i64, scratch_operands = 0 : i64, tpu.core_type = #tpu.core_type<tc>, window_params = [{transform_indices = @transform_0, window_bounds = array<i64: 128, 32>}, {pipeline_mode = #tpu.pipeline_mode<synchronous>, transform_indices = @transform_1, window_bounds = array<i64: 32, 128>}, {pipeline_mode = #tpu.pipeline_mode<synchronous>, transform_indices = @transform_2, window_bounds = array<i64: 1, 128>}, {pipeline_mode = #tpu.pipeline_mode<synchronous>, transform_indices = @transform_3, window_bounds = array<i64: 128, 128>}, {pipeline_mode = #tpu.pipeline_mode<synchronous>, transform_indices = @transform_4, window_bounds = array<i64: 1, 128>}, {transform_indices = @transform_5, window_bounds = array<i64: 128, 128>}]} {
    %c0 = arith.constant 0 : index
    %c0_0 = arith.constant 0 : index
    %0 = vector.load %arg1[%c0, %c0_0] : memref<128x32xf32, #tpu.memory_space<vmem>>, vector<64x32xf32>
    %c0_1 = arith.constant 0 : index
    %c0_2 = arith.constant 0 : index
    %1 = vector.load %arg2[%c0_1, %c0_2] : memref<32x128xf32, #tpu.memory_space<vmem>>, vector<32x128xf32>
    %cst = arith.constant dense<0.000000e+00> : vector<64x128xf32>
    %2 = tpu.matmul %0, %1, %cst {dimension_numbers = #tpu.dot_dimension_numbers<[1], [0], [0], [1], [0, 0, 1, 1], [], []>} : vector<64x32xf32>, vector<32x128xf32>, vector<64x128xf32> -> vector<64x128xf32>
    %c0_3 = arith.constant 0 : index
    %c0_4 = arith.constant 0 : index
    %3 = vector.load %arg3[%c0_3, %c0_4] : memref<1x128xf32, #tpu.memory_space<vmem>>, vector<1x128xf32>
    %4 = vector.broadcast %3 : vector<1x128xf32> to vector<64x128xf32>
    %5 = arith.addf %2, %4 : vector<64x128xf32>
    %6 = math.tanh %5 : vector<64x128xf32>
    %c0_5 = arith.constant 0 : index
    %c0_6 = arith.constant 0 : index
    %7 = vector.load %arg4[%c0_5, %c0_6] : memref<128x128xf32, #tpu.memory_space<vmem>>, vector<128x128xf32>
    %cst_7 = arith.constant dense<0.000000e+00> : vector<64x128xf32>
    %8 = tpu.matmul %6, %7, %cst_7 {dimension_numbers = #tpu.dot_dimension_numbers<[1], [0], [0], [1], [0, 0, 1, 1], [], []>} : vector<64x128xf32>, vector<128x128xf32>, vector<64x128xf32> -> vector<64x128xf32>
    %c0_8 = arith.constant 0 : index
    %c0_9 = arith.constant 0 : index
    %9 = vector.load %arg5[%c0_8, %c0_9] : memref<1x128xf32, #tpu.memory_space<vmem>>, vector<1x128xf32>
    %10 = vector.broadcast %9 : vector<1x128xf32> to vector<64x128xf32>
    %11 = arith.addf %8, %10 : vector<64x128xf32>
    %c0_10 = arith.constant 0 : index
    %c0_11 = arith.constant 0 : index
    %12 = vector.load %arg6[%c0_10, %c0_11] : memref<128x128xf32, #tpu.memory_space<vmem>>, vector<64x128xf32>
    tpu.vector_store %arg6[%c0_10, %c0_11], %11 {strides = array<i32>} : memref<128x128xf32, #tpu.memory_space<vmem>>, vector<64x128xf32>,
    %c64 = arith.constant 64 : index
    %c0_12 = arith.constant 0 : index
    %13 = vector.load %arg1[%c64, %c0_12] : memref<128x32xf32, #tpu.memory_space<vmem>>, vector<64x32xf32>
    %c0_13 = arith.constant 0 : index
    %c0_14 = arith.constant 0 : index
    %14 = vector.load %arg2[%c0_13, %c0_14] : memref<32x128xf32, #tpu.memory_space<vmem>>, vector<32x128xf32>
    %cst_15 = arith.constant dense<0.000000e+00> : vector<64x128xf32>
    %15 = tpu.matmul %13, %14, %cst_15 {dimension_numbers = #tpu.dot_dimension_numbers<[1], [0], [0], [1], [0, 0, 1, 1], [], []>} : vector<64x32xf32>, vector<32x128xf32>, vector<64x128xf32> -> vector<64x128xf32>
    %c0_16 = arith.constant 0 : index
    %c0_17 = arith.constant 0 : index
    %16 = vector.load %arg3[%c0_16, %c0_17] : memref<1x128xf32, #tpu.memory_space<vmem>>, vector<1x128xf32>
    %17 = vector.broadcast %16 : vector<1x128xf32> to vector<64x128xf32>
    %18 = arith.addf %15, %17 : vector<64x128xf32>
    %19 = math.tanh %18 : vector<64x128xf32>
    %c0_18 = arith.constant 0 : index
    %c0_19 = arith.constant 0 : index
    %20 = vector.load %arg4[%c0_18, %c0_19] : memref<128x128xf32, #tpu.memory_space<vmem>>, vector<128x128xf32>
    %cst_20 = arith.constant dense<0.000000e+00> : vector<64x128xf32>
    %21 = tpu.matmul %19, %20, %cst_20 {dimension_numbers = #tpu.dot_dimension_numbers<[1], [0], [0], [1], [0, 0, 1, 1], [], []>} : vector<64x128xf32>, vector<128x128xf32>, vector<64x128xf32> -> vector<64x128xf32>
    %c0_21 = arith.constant 0 : index
    %c0_22 = arith.constant 0 : index
    %22 = vector.load %arg5[%c0_21, %c0_22] : memref<1x128xf32, #tpu.memory_space<vmem>>, vector<1x128xf32>
    %23 = vector.broadcast %22 : vector<1x128xf32> to vector<64x128xf32>
    %24 = arith.addf %21, %23 : vector<64x128xf32>
    %c64_23 = arith.constant 64 : index
    %c0_24 = arith.constant 0 : index
    %25 = vector.load %arg6[%c64_23, %c0_24] : memref<128x128xf32, #tpu.memory_space<vmem>>, vector<64x128xf32>
    tpu.vector_store %arg6[%c64_23, %c0_24], %24 {strides = array<i32>} : memref<128x128xf32, #tpu.memory_space<vmem>>, vector<64x128xf32>,
    return
  }
  func.func @transform_0(%arg0: i32) -> (i32, i32) {
    %c0_i32 = arith.constant 0 : i32
    %c0_i32_0 = arith.constant 0 : i32
    return %arg0, %c0_i32 : i32, i32
  }
  func.func @transform_1(%arg0: i32) -> (i32, i32) {
    %c0_i32 = arith.constant 0 : i32
    %c0_i32_0 = arith.constant 0 : i32
    %c0_i32_1 = arith.constant 0 : i32
    return %c0_i32, %c0_i32_0 : i32, i32
  }
  func.func @transform_2(%arg0: i32) -> (i32, i32) {
    %c0_i32 = arith.constant 0 : i32
    %c0_i32_0 = arith.constant 0 : i32
    %c0_i32_1 = arith.constant 0 : i32
    return %c0_i32, %c0_i32_0 : i32, i32
  }
  func.func @transform_3(%arg0: i32) -> (i32, i32) {
    %c0_i32 = arith.constant 0 : i32
    %c0_i32_0 = arith.constant 0 : i32
    %c0_i32_1 = arith.constant 0 : i32
    return %c0_i32, %c0_i32_0 : i32, i32
  }
  func.func @transform_4(%arg0: i32) -> (i32, i32) {
    %c0_i32 = arith.constant 0 : i32
    %c0_i32_0 = arith.constant 0 : i32
    %c0_i32_1 = arith.constant 0 : i32
    return %c0_i32, %c0_i32_0 : i32, i32
  }
  func.func @transform_5(%arg0: i32) -> (i32, i32) {
    %c0_i32 = arith.constant 0 : i32
    %c0_i32_0 = arith.constant 0 : i32
    return %arg0, %c0_i32 : i32, i32
  }
}

module attributes {stable_mosaic.version = 11 : i64} {
  func.func @_fused_mlp_kernel(%arg0: i32, %arg1: memref<128x32xf32, #tpu.memory_space<vmem>>, %arg2: memref<32x128xf32, #tpu.memory_space<vmem>>, %arg3: memref<1x128xf32, #tpu.memory_space<vmem>>, %arg4: memref<128x128xf32, #tpu.memory_space<vmem>>, %arg5: memref<1x128xf32, #tpu.memory_space<vmem>>, %arg6: memref<128x128xf32, #tpu.memory_space<vmem>>) attributes {dimension_semantics = [#tpu.dimension_semantics<parallel>], iteration_bounds = array<i64: 2>, scalar_prefetch = 0 : i64, scratch_operands = 0 : i64, tpu.core_type = #tpu.core_type<tc>, window_params = [{transform_indices = @transform_0, window_bounds = array<i64: 128, 32>}, {pipeline_mode = #tpu.pipeline_mode<synchronous>, transform_indices = @transform_1, window_bounds = array<i64: 32, 128>}, {pipeline_mode = #tpu.pipeline_mode<synchronous>, transform_indices = @transform_2, window_bounds = array<i64: 1, 128>}, {pipeline_mode = #tpu.pipeline_mode<synchronous>, transform_indices = @transform_3, window_bounds = array<i64: 128, 128>}, {pipeline_mode = #tpu.pipeline_mode<synchronous>, transform_indices = @transform_4, window_bounds = array<i64: 1, 128>}, {transform_indices = @transform_5, window_bounds = array<i64: 128, 128>}]} {
    %c0 = arith.constant 0 : index
    %c0_0 = arith.constant 0 : index
    %0 = vector.load %arg1[%c0, %c0_0] : memref<128x32xf32, #tpu.memory_space<vmem>>, vector<64x32xf32>
    %c0_1 = arith.constant 0 : index
    %c0_2 = arith.constant 0 : index
    %1 = vector.load %arg2[%c0_1, %c0_2] : memref<32x128xf32, #tpu.memory_space<vmem>>, vector<32x128xf32>
    %cst = arith.constant dense<0.000000e+00> : vector<64x128xf32>
    %2 = tpu.matmul %0, %1, %cst {dimension_numbers = #tpu.dot_dimension_numbers<[1], [0], [0], [1], [0, 0, 1, 1], [], []>} : vector<64x32xf32>, vector<32x128xf32>, vector<64x128xf32> -> vector<64x128xf32>
    %c0_3 = arith.constant 0 : index
    %c0_4 = arith.constant 0 : index
    %3 = vector.load %arg3[%c0_3, %c0_4] : memref<1x128xf32, #tpu.memory_space<vmem>>, vector<1x128xf32>
    %4 = vector.broadcast %3 : vector<1x128xf32> to vector<64x128xf32>
    %5 = arith.addf %2, %4 : vector<64x128xf32>
    %6 = math.tanh %5 : vector<64x128xf32>
    %c0_5 = arith.constant 0 : index
    %c0_6 = arith.constant 0 : index
    %7 = vector.load %arg4[%c0_5, %c0_6] : memref<128x128xf32, #tpu.memory_space<vmem>>, vector<128x128xf32>
    %cst_7 = arith.constant dense<0.000000e+00> : vector<64x128xf32>
    %8 = tpu.matmul %6, %7, %cst_7 {dimension_numbers = #tpu.dot_dimension_numbers<[1], [0], [0], [1], [0, 0, 1, 1], [], []>} : vector<64x128xf32>, vector<128x128xf32>, vector<64x128xf32> -> vector<64x128xf32>
    %c0_8 = arith.constant 0 : index
    %c0_9 = arith.constant 0 : index
    %9 = vector.load %arg5[%c0_8, %c0_9] : memref<1x128xf32, #tpu.memory_space<vmem>>, vector<1x128xf32>
    %10 = vector.broadcast %9 : vector<1x128xf32> to vector<64x128xf32>
    %11 = arith.addf %8, %10 : vector<64x128xf32>
    %c0_10 = arith.constant 0 : index
    %c0_11 = arith.constant 0 : index
    %12 = vector.load %arg6[%c0_10, %c0_11] : memref<128x128xf32, #tpu.memory_space<vmem>>, vector<64x128xf32>
    tpu.vector_store %arg6[%c0_10, %c0_11], %11 {strides = array<i32>} : memref<128x128xf32, #tpu.memory_space<vmem>>, vector<64x128xf32>,
    %c64 = arith.constant 64 : index
    %c0_12 = arith.constant 0 : index
    %13 = vector.load %arg1[%c64, %c0_12] : memref<128x32xf32, #tpu.memory_space<vmem>>, vector<64x32xf32>
    %c0_13 = arith.constant 0 : index
    %c0_14 = arith.constant 0 : index
    %14 = vector.load %arg2[%c0_13, %c0_14] : memref<32x128xf32, #tpu.memory_space<vmem>>, vector<32x128xf32>
    %cst_15 = arith.constant dense<0.000000e+00> : vector<64x128xf32>
    %15 = tpu.matmul %13, %14, %cst_15 {dimension_numbers = #tpu.dot_dimension_numbers<[1], [0], [0], [1], [0, 0, 1, 1], [], []>} : vector<64x32xf32>, vector<32x128xf32>, vector<64x128xf32> -> vector<64x128xf32>
    %c0_16 = arith.constant 0 : index
    %c0_17 = arith.constant 0 : index
    %16 = vector.load %arg3[%c0_16, %c0_17] : memref<1x128xf32, #tpu.memory_space<vmem>>, vector<1x128xf32>
    %17 = vector.broadcast %16 : vector<1x128xf32> to vector<64x128xf32>
    %18 = arith.addf %15, %17 : vector<64x128xf32>
    %19 = math.tanh %18 : vector<64x128xf32>
    %c0_18 = arith.constant 0 : index
    %c0_19 = arith.constant 0 : index
    %20 = vector.load %arg4[%c0_18, %c0_19] : memref<128x128xf32, #tpu.memory_space<vmem>>, vector<128x128xf32>
    %cst_20 = arith.constant dense<0.000000e+00> : vector<64x128xf32>
    %21 = tpu.matmul %19, %20, %cst_20 {dimension_numbers = #tpu.dot_dimension_numbers<[1], [0], [0], [1], [0, 0, 1, 1], [], []>} : vector<64x128xf32>, vector<128x128xf32>, vector<64x128xf32> -> vector<64x128xf32>
    %c0_21 = arith.constant 0 : index
    %c0_22 = arith.constant 0 : index
    %22 = vector.load %arg5[%c0_21, %c0_22] : memref<1x128xf32, #tpu.memory_space<vmem>>, vector<1x128xf32>
    %23 = vector.broadcast %22 : vector<1x128xf32> to vector<64x128xf32>
    %24 = arith.addf %21, %23 : vector<64x128xf32>
    %c64_23 = arith.constant 64 : index
    %c0_24 = arith.constant 0 : index
    %25 = vector.load %arg6[%c64_23, %c0_24] : memref<128x128xf32, #tpu.memory_space<vmem>>, vector<64x128xf32>
    tpu.vector_store %arg6[%c64_23, %c0_24], %24 {strides = array<i32>} : memref<128x128xf32, #tpu.memory_space<vmem>>, vector<64x128xf32>,
    return
  }
  func.func @transform_0(%arg0: i32) -> (i32, i32) {
    %c0_i32 = arith.constant 0 : i32
    %c0_i32_0 = arith.constant 0 : i32
    return %arg0, %c0_i32 : i32, i32
  }
  func.func @transform_1(%arg0: i32) -> (i32, i32) {
    %c0_i32 = arith.constant 0 : i32
    %c0_i32_0 = arith.constant 0 : i32
    %c0_i32_1 = arith.constant 0 : i32
    return %c0_i32, %c0_i32_0 : i32, i32
  }
  func.func @transform_2(%arg0: i32) -> (i32, i32) {
    %c0_i32 = arith.constant 0 : i32
    %c0_i32_0 = arith.constant 0 : i32
    %c0_i32_1 = arith.constant 0 : i32
    return %c0_i32, %c0_i32_0 : i32, i32
  }
  func.func @transform_3(%arg0: i32) -> (i32, i32) {
    %c0_i32 = arith.constant 0 : i32
    %c0_i32_0 = arith.constant 0 : i32
    %c0_i32_1 = arith.constant 0 : i32
    return %c0_i32, %c0_i32_0 : i32, i32
  }
  func.func @transform_4(%arg0: i32) -> (i32, i32) {
    %c0_i32 = arith.constant 0 : i32
    %c0_i32_0 = arith.constant 0 : i32
    %c0_i32_1 = arith.constant 0 : i32
    return %c0_i32, %c0_i32_0 : i32, i32
  }
  func.func @transform_5(%arg0: i32) -> (i32, i32) {
    %c0_i32 = arith.constant 0 : i32
    %c0_i32_0 = arith.constant 0 : i32
    return %arg0, %c0_i32 : i32, i32
  }
}

</mosaic_0001>

<llo_original>
// kernel: tpu_custom_call.1
$region0: #{tpu_custom_call.1}
  #allocation0 [shape = 'u32[]', space=smem, size = 0x4, offset = 0x4, fixed_abs, tag = 'smem constant byte address 0x4 - core index']
  #allocation1 [shape = 'u32[72,128]{1,0:T(1,128)}', space=vmem, size = 0x9000, scoped, tag = 'internal scratch']
  %s0 = inlined_call_operand.vmem [shape: f32[256,32], index: 0, kind: input, shape index: {}]
  %s1 = inlined_call_operand.vmem [shape: f32[32,128], index: 1, kind: input, shape index: {}]
  %s2 = inlined_call_operand.vmem [shape: f32[1,128], index: 2, kind: input, shape index: {}]
  %s3 = inlined_call_operand.vmem [shape: f32[128,128], index: 3, kind: input, shape index: {}]
  %s4 = inlined_call_operand.vmem [shape: f32[1,128], index: 4, kind: input, shape index: {}]
  %s5 = inlined_call_operand.hbm [shape: f32[256,128], index: 5, kind: output, shape index: {}]
  %s6 = sld [smem:[#allocation0]]
  $region53: #{tpu_custom_call.1} parent=0
    _
  %s8 = ssub.s32 1, %s6
  %s9 = scalar_select 0, %s8, %s6
  $region1: #{tpu_custom_call.1} parent=0
    #allocation2 [shape = 'u8[131072]{0}', space=vmem, size = 0x20000, scoped, tag = 'output window, operand 0']
    #allocation3 [shape = 's32[2]{0}', space=sflag, size = 0x8, scoped, tag = 'scoped memory for tpu_custom_call.1']
    %10 = vsyncpa [#allocation3], 0
    %s11 = scalar_lea.sflag [#allocation3], 1
    %12 = vsyncpa %s11, 0
    loop: start=0, step=1, limit=4
    $region2: #{tpu_custom_call.1} parent=1 // loop_pre_header
      _
    $region3: #{tpu_custom_call.1} parent=1 // loop_header
      %s14 = sphi 0, %s18
      %p15 = scmp.ge.s32.totalorder %s14, 4
      %s24 = sphi 0, %s26
      %s27 = sphi 0, %s24
      %s28 = sphi 0, %s27
      %s44 = sphi 0, %s28
      %s48 = sphi 0, %s48
      %s50 = sphi 0, %s48
      %s51 = sphi 0, %s50
      %s65 = sphi 0, %s51
      %s69 = sphi 0, %s69
      %s71 = sphi 0, %s69
      %s72 = sphi 0, %s71
      %s86 = sphi 0, %s72
      %s90 = sphi 0, %s90
      %s92 = sphi 0, %s90
      %s93 = sphi 0, %s92
      %s107 = sphi 0, %s93
      %s111 = sphi 0, %s111
      %s113 = sphi 0, %s111
      %s114 = sphi 0, %s113
      %s128 = sphi 0, %s114
      %s134 = sphi 0, %s136
      %s137 = sphi 0, %s134
      %s138 = sphi 0, %s137
      %s154 = sphi 0, %s138
    $region4: #{tpu_custom_call.1} parent=1 // loop_header_branch
      %17 = sbr.rel (%p15) target = $region8
    $region5: #{tpu_custom_call.1} parent=1 // loop_body
      %s19 = ssub.s32 %s14, 1
      %s20 = ssub.s32 %s14, 2
      %s21 = sadd.s32 %s14, 1
      %s22 = ssub.s32 %s14, %s21
      %p23 = scmp.eq.s32.totalorder %s22, 0
      %s25 = sadd.s32 %s24, 1
      %s26 = scalar_select %p23, %s24, %s25
      %p29 = pneg %p23
      %p30 = scmp.eq.s32.totalorder %s14, 1
      %p31 = por %p29, %p30
      %p32 = scmp.ne.s32.totalorder %s24, %s27
      %p33 = scmp.eq.s32.totalorder %s14, 0
      %p34 = por %p32, %p33
      %p35 = scmp.ne.s32.totalorder %s24, %s27
      %p36 = scmp.eq.s32.totalorder %s19, 1
      %p37 = por %p35, %p36
      %p38 = scmp.ne.s32.totalorder %s27, %s28
      %p39 = scmp.eq.s32.totalorder %s19, 0
      %p40 = por %p38, %p39
      %p41 = scmp.ne.s32.totalorder %s27, %s28
      %p42 = scmp.eq.s32.totalorder %s20, 1
      %p43 = por %p41, %p42
      %p45 = scmp.ne.s32.totalorder %s28, %s44
      %p46 = scmp.eq.s32.totalorder %s20, 0
      %p47 = por %p45, %p46
      %s49 = sadd.s32 %s48, 1
      %p52 = scmp.eq.s32.totalorder %s14, 1
      %p53 = scmp.ne.s32.totalorder %s48, %s50
      %p54 = scmp.eq.s32.totalorder %s14, 0
      %p55 = por %p53, %p54
      %p56 = scmp.ne.s32.totalorder %s48, %s50
      %p57 = scmp.eq.s32.totalorder %s19, 1
      %p58 = por %p56, %p57
      %p59 = scmp.ne.s32.totalorder %s50, %s51
      %p60 = scmp.eq.s32.totalorder %s19, 0
      %p61 = por %p59, %p60
      %p62 = scmp.ne.s32.totalorder %s50, %s51
      %p63 = scmp.eq.s32.totalorder %s20, 1
      %p64 = por %p62, %p63
      %p66 = scmp.ne.s32.totalorder %s51, %s65
      %p67 = scmp.eq.s32.totalorder %s20, 0
      %p68 = por %p66, %p67
      %s70 = sadd.s32 %s69, 1
      %p73 = scmp.eq.s32.totalorder %s14, 1
      %p74 = scmp.ne.s32.totalorder %s69, %s71
      %p75 = scmp.eq.s32.totalorder %s14, 0
      %p76 = por %p74, %p75
      %p77 = scmp.ne.s32.totalorder %s69, %s71
      %p78 = scmp.eq.s32.totalorder %s19, 1
      %p79 = por %p77, %p78
      %p80 = scmp.ne.s32.totalorder %s71, %s72
      %p81 = scmp.eq.s32.totalorder %s19, 0
      %p82 = por %p80, %p81
      %p83 = scmp.ne.s32.totalorder %s71, %s72
      %p84 = scmp.eq.s32.totalorder %s20, 1
      %p85 = por %p83, %p84
      %p87 = scmp.ne.s32.totalorder %s72, %s86
      %p88 = scmp.eq.s32.totalorder %s20, 0
      %p89 = por %p87, %p88
      %s91 = sadd.s32 %s90, 1
      %p94 = scmp.eq.s32.totalorder %s14, 1
      %p95 = scmp.ne.s32.totalorder %s90, %s92
      %p96 = scmp.eq.s32.totalorder %s14, 0
      %p97 = por %p95, %p96
      %p98 = scmp.ne.s32.totalorder %s90, %s92
      %p99 = scmp.eq.s32.totalorder %s19, 1
      %p100 = por %p98, %p99
      %p101 = scmp.ne.s32.totalorder %s92, %s93
      %p102 = scmp.eq.s32.totalorder %s19, 0
      %p103 = por %p101, %p102
      %p104 = scmp.ne.s32.totalorder %s92, %s93
      %p105 = scmp.eq.s32.totalorder %s20, 1
      %p106 = por %p104, %p105
      %p108 = scmp.ne.s32.totalorder %s93, %s107
      %p109 = scmp.eq.s32.totalorder %s20, 0
      %p110 = por %p108, %p109
      %s112 = sadd.s32 %s111, 1
      %p115 = scmp.eq.s32.totalorder %s14, 1
      %p116 = scmp.ne.s32.totalorder %s111, %s113
      %p117 = scmp.eq.s32.totalorder %s14, 0
      %p118 = por %p116, %p117
      %p119 = scmp.ne.s32.totalorder %s111, %s113
      %p120 = scmp.eq.s32.totalorder %s19, 1
      %p121 = por %p119, %p120
      %p122 = scmp.ne.s32.totalorder %s113, %s114
      %p123 = scmp.eq.s32.totalorder %s19, 0
      %p124 = por %p122, %p123
      %p125 = scmp.ne.s32.totalorder %s113, %s114
      %p126 = scmp.eq.s32.totalorder %s20, 1
      %p127 = por %p125, %p126
      %p129 = scmp.ne.s32.totalorder %s114, %s128
      %p130 = scmp.eq.s32.totalorder %s20, 0
      %p131 = por %p129, %p130
      %s132 = ssub.s32 %s14, %s21
      %p133 = scmp.eq.s32.totalorder %s132, 0
      %s135 = sadd.s32 %s134, 1
      %s136 = scalar_select %p133, %s134, %s135
      %p139 = pneg %p133
      %p140 = scmp.eq.s32.totalorder %s14, 1
      %p141 = por %p139, %p140
      %p142 = scmp.ne.s32.totalorder %s134, %s137
      %p143 = scmp.eq.s32.totalorder %s14, 0
      %p144 = por %p142, %p143
      %p145 = scmp.ne.s32.totalorder %s134, %s137
      %p146 = scmp.eq.s32.totalorder %s19, 1
      %p147 = por %p145, %p146
      %p148 = scmp.ne.s32.totalorder %s137, %s138
      %p149 = scmp.eq.s32.totalorder %s19, 0
      %p150 = por %p148, %p149
      %p151 = scmp.ne.s32.totalorder %s137, %s138
      %p152 = scmp.eq.s32.totalorder %s20, 1
      %p153 = por %p151, %p152
      %p155 = scmp.ne.s32.totalorder %s138, %s154
      %p156 = scmp.eq.s32.totalorder %s20, 0
      %p157 = por %p155, %p156
      %p158 = scmp.le.s32.totalorder 1, %s14
      %p159 = scmp.lt.s32.totalorder %s14, 3
      %p160 = pnand %p158, %p159
      %p161 = pneg %p160
      // Predicated region
      $region9: #{tpu_custom_call.1} parent=5 // pred_check
        _
      $region10: #{tpu_custom_call.1} parent=5 // pred_check_branch
        %163 = sbr.rel (%p160) target = $region12
      $region11: #{tpu_custom_call.1} parent=5 // pred_region
        %s164 = ssub.s32 %s14, 1
        // Predicated region
        $region13: #{tpu_custom_call.1} parent=11 // pred_check
          %p165 = pneg %p61
        $region14: #{tpu_custom_call.1} parent=11 // pred_check_branch
          %167 = sbr.rel (%p165) target = $region16
        $region15: #{tpu_custom_call.1} parent=11 // pred_region
          _
        $region16: #{tpu_custom_call.1} parent=11 // pred_fallthru
          _
        // Predicated region
        $region17: #{tpu_custom_call.1} parent=11 // pred_check
          %p168 = pneg %p82
        $region18: #{tpu_custom_call.1} parent=11 // pred_check_branch
          %170 = sbr.rel (%p168) target = $region20
        $region19: #{tpu_custom_call.1} parent=11 // pred_region
          _
        $region20: #{tpu_custom_call.1} parent=11 // pred_fallthru
          _
        // Predicated region
        $region21: #{tpu_custom_call.1} parent=11 // pred_check
          %p171 = pneg %p103
        $region22: #{tpu_custom_call.1} parent=11 // pred_check_branch
          %173 = sbr.rel (%p171) target = $region24
        $region23: #{tpu_custom_call.1} parent=11 // pred_region
          _
        $region24: #{tpu_custom_call.1} parent=11 // pred_fallthru
          _
        // Predicated region
        $region25: #{tpu_custom_call.1} parent=11 // pred_check
          %p174 = pneg %p124
        $region26: #{tpu_custom_call.1} parent=11 // pred_check_branch
          %176 = sbr.rel (%p174) target = $region28
        $region27: #{tpu_custom_call.1} parent=11 // pred_region
          _
        $region28: #{tpu_custom_call.1} parent=11 // pred_fallthru
          _
      $region12: #{tpu_custom_call.1} parent=5 // pred_fallthru
        _
      %p177 = scmp.lt.s32.totalorder %s14, 2
      // Predicated region
      $region29: #{tpu_custom_call.1} parent=5 // pred_check
        %p178 = pneg %p177
      $region30: #{tpu_custom_call.1} parent=5 // pred_check_branch
        %180 = sbr.rel (%p178) target = $region32
      $region31: #{tpu_custom_call.1} parent=5 // pred_region
        // Predicated region
        $region33: #{tpu_custom_call.1} parent=31 // pred_check
          %p181 = pneg %p34
        $region34: #{tpu_custom_call.1} parent=31 // pred_check_branch
          %183 = sbr.rel (%p181) target = $region36
        $region35: #{tpu_custom_call.1} parent=31 // pred_region
          %s184 = smul.u32 16, %s14
          %p185 = scmp.lt.s32.totalorder %s184, 31
          %s186 = scalar_select %p185, %s184, 31
          %s187 = smul.addr %s186, 8
          %s188 = scalar_lea.vmem %s0, %s187
          %s189 = smul.u32 16, %s14
        $region36: #{tpu_custom_call.1} parent=31 // pred_fallthru
          _
      $region32: #{tpu_custom_call.1} parent=5 // pred_fallthru
        _
      %p190 = scmp.le.s32.totalorder 1, %s14
      %p191 = scmp.lt.s32.totalorder %s14, 3
      %p192 = pnand %p190, %p191
      %p193 = pneg %p192
      // Predicated region
      $region37: #{tpu_custom_call.1} parent=5 // pred_check
        _
      $region38: #{tpu_custom_call.1} parent=5 // pred_check_branch
        %195 = sbr.rel (%p192) target = $region40
      $region39: #{tpu_custom_call.1} parent=5 // pred_region
        %s196 = ssub.s32 %s14, 1
        %s197 = smul.u32 16, %s19
        %p198 = scmp.lt.s32.totalorder %s197, 31
        %s199 = scalar_select %p198, %s197, 31
        %s200 = smul.addr %s199, 8
        %s201 = scalar_lea.vmem %s0, %s200
        %p202 = pneg %p40
        %p203 = pneg %p37
        %p204 = pneg %p61
        %p205 = pneg %p58
        %p206 = pneg %p82
        %p207 = pneg %p79
        %p208 = pneg %p103
        %p209 = pneg %p100
        %p210 = pneg %p124
        %p211 = pneg %p121
        %p212 = pneg %p150
        %p213 = pneg %p147
        %s214 = sand.u32 %s137, 1
        %s215 = scalar_lea.sflag [#allocation3], %s214
        %s216 = sand.u32 %s137, 1
        %s217 = smul.addr %s216, 128
        %s218 = scalar_lea.vmem [#allocation2], %s217
        %s219 = smul.u32 16, %s19
        %p220 = scmp.lt.s32.totalorder %s219, 31
        %s221 = scalar_select %p220, %s219, 31
        %s222 = smul.addr %s221, 8
        %s223 = scalar_lea.vmem %s0, %s222
        %s224 = smul.u32 16, %s19
        %s225 = smul.u32 16, %s19
        %v226 = vld [vmem:[%s223] sm:$0xff]
        %v227 = vld [vmem:[%s223 + $0x8] sm:$0xff]
        %v228 = vld [vmem:[%s223 + $0x10] sm:$0xff]
        %v229 = vld [vmem:[%s223 + $0x18] sm:$0xff]
        %v230 = vld [vmem:[%s223 + $0x20] sm:$0xff]
        %v231 = vld [vmem:[%s223 + $0x28] sm:$0xff]
        %v232 = vld [vmem:[%s223 + $0x30] sm:$0xff]
        %v233 = vld [vmem:[%s223 + $0x38] sm:$0xff]
        %v234 = vld [vmem:[%s1] sm:$0xff]
        %v235 = vld [vmem:[%s1 + $0x8] sm:$0xff]
        %v236 = vld [vmem:[%s1 + $0x10] sm:$0xff]
        %v237 = vld [vmem:[%s1 + $0x18] sm:$0xff]
        %v238 = vld [vmem:[%s2] sm:$0x1]
        %v240 = vperm.slane %v238, 0
        %vm242 = vcmask 261120
        %v244 = vsel %vm242, %v226, 0
        %v247 = vsel %vm242, %v227, 0
        %v250 = vsel %vm242, %v228, 0
        %v253 = vsel %vm242, %v229, 0
        %v256 = vsel %vm242, %v230, 0
        %v259 = vsel %vm242, %v231, 0
        %v262 = vsel %vm242, %v232, 0
        %v265 = vsel %vm242, %v233, 0
        %267 = vmatpush.msra.mxu0 0.0
        %268 = vmatpush.msra.mxu0 0.0
        %269 = vmatpush.msra.mxu0 0.0
        %270 = vmatpush.msra.mxu0 0.0
        %271 = vmatpush.msra.mxu0 0.0
        %272 = vmatpush.msra.mxu0 0.0
        %273 = vmatpush.msra.mxu0 0.0
        %274 = vmatpush.msra.mxu0 0.0
        %275 = vmatpush.msra.mxu0 0.0
        %276 = vmatpush.msra.mxu0 0.0
        %277 = vmatpush.msra.mxu0 0.0
        %278 = vmatpush.msra.mxu0 0.0
        %279 = vmatpush.msra.mxu0 %v237
        %280 = vmatpush.msra.mxu0 %v236
        %281 = vmatpush.msra.mxu0 %v235
        %282 = vmatpush.msra.mxu0 %v234
        %283 = vmatmul.f32.gmra.mxu0 %v244
        %v284 = vpop.f32.mrf.mxu0
        %v285 = vadd.f32 %v240, %v284
        %286 = vmatmul.f32.gmra.mxu0 %v247
        %v287 = vpop.f32.mrf.mxu0
        %v288 = vadd.f32 %v240, %v287
        %289 = vmatmul.f32.gmra.mxu0 %v250
        %v290 = vpop.f32.mrf.mxu0
        %v291 = vadd.f32 %v240, %v290
        %292 = vmatmul.f32.gmra.mxu0 %v253
        %v293 = vpop.f32.mrf.mxu0
        %v294 = vadd.f32 %v240, %v293
        %295 = vmatmul.f32.gmra.mxu0 %v256
        %v296 = vpop.f32.mrf.mxu0
        %v297 = vadd.f32 %v240, %v296
        %298 = vmatmul.f32.gmra.mxu0 %v259
        %v299 = vpop.f32.mrf.mxu0
        %v300 = vadd.f32 %v240, %v299
        %301 = vmatmul.f32.gmra.mxu0 %v262
        %v302 = vpop.f32.mrf.mxu0
        %v303 = vadd.f32 %v240, %v302
        %304 = vmatmul.f32.gmra.mxu0 %v265
        %v305 = vpop.f32.mrf.mxu0
        %v306 = vadd.f32 %v240, %v305
        %307 = vdwg.mxu0
        %v308 = vtanh.pop %v285
        %v309 = vtanh.pop %v288
        %v310 = vtanh.pop %v291
        %v311 = vtanh.pop %v294
        %v312 = vtanh.pop %v297
        %v313 = vtanh.pop %v300
        %v314 = vtanh.pop %v303
        %v315 = vtanh.pop %v306
        %v316 = vld [vmem:[%s3] sm:$0xff]
        %v317 = vld [vmem:[%s3 + $0x8] sm:$0xff]
        %v318 = vld [vmem:[%s3 + $0x10] sm:$0xff]
        %v319 = vld [vmem:[%s3 + $0x18] sm:$0xff]
        %v320 = vld [vmem:[%s3 + $0x20] sm:$0xff]
        %v321 = vld [vmem:[%s3 + $0x28] sm:$0xff]
        %v322 = vld [vmem:[%s3 + $0x30] sm:$0xff]
        %v323 = vld [vmem:[%s3 + $0x38] sm:$0xff]
        %v324 = vld [vmem:[%s3 + $0x40] sm:$0xff]
        %v325 = vld [vmem:[%s3 + $0x48] sm:$0xff]
        %v326 = vld [vmem:[%s3 + $0x50] sm:$0xff]
        %v327 = vld [vmem:[%s3 + $0x58] sm:$0xff]
        %v328 = vld [vmem:[%s3 + $0x60] sm:$0xff]
        %v329 = vld [vmem:[%s3 + $0x68] sm:$0xff]
        %v330 = vld [vmem:[%s3 + $0x70] sm:$0xff]
        %v331 = vld [vmem:[%s3 + $0x78] sm:$0xff]
        %v332 = vld [vmem:[%s4] sm:$0x1]
        %v334 = vperm.slane %v332, 0
        %336 = vmatpush.msra.mxu0 %v331
        %337 = vmatpush.msra.mxu0 %v330
        %338 = vmatpush.msra.mxu0 %v329
        %339 = vmatpush.msra.mxu0 %v328
        %340 = vmatpush.msra.mxu0 %v327
        %341 = vmatpush.msra.mxu0 %v326
        %342 = vmatpush.msra.mxu0 %v325
        %343 = vmatpush.msra.mxu0 %v324
        %344 = vmatpush.msra.mxu0 %v323
        %345 = vmatpush.msra.mxu0 %v322
        %346 = vmatpush.msra.mxu0 %v321
        %347 = vmatpush.msra.mxu0 %v320
        %348 = vmatpush.msra.mxu0 %v319
        %349 = vmatpush.msra.mxu0 %v318
        %350 = vmatpush.msra.mxu0 %v317
        %351 = vmatpush.msra.mxu0 %v316
        %352 = vmatmul.f32.gmra.mxu0 %v308
        %v353 = vpop.f32.mrf.mxu0
        %v354 = vadd.f32 %v334, %v353
        %355 = vmatmul.f32.gmra.mxu0 %v309
        %v356 = vpop.f32.mrf.mxu0
        %v357 = vadd.f32 %v334, %v356
        %358 = vmatmul.f32.gmra.mxu0 %v310
        %v359 = vpop.f32.mrf.mxu0
        %v360 = vadd.f32 %v334, %v359
        %361 = vmatmul.f32.gmra.mxu0 %v311
        %v362 = vpop.f32.mrf.mxu0
        %v363 = vadd.f32 %v334, %v362
        %364 = vmatmul.f32.gmra.mxu0 %v312
        %v365 = vpop.f32.mrf.mxu0
        %v366 = vadd.f32 %v334, %v365
        %367 = vmatmul.f32.gmra.mxu0 %v313
        %v368 = vpop.f32.mrf.mxu0
        %v369 = vadd.f32 %v334, %v368
        %370 = vmatmul.f32.gmra.mxu0 %v314
        %v371 = vpop.f32.mrf.mxu0
        %v372 = vadd.f32 %v334, %v371
        %373 = vmatmul.f32.gmra.mxu0 %v315
        %v374 = vpop.f32.mrf.mxu0
        %v375 = vadd.f32 %v334, %v374
        %376 = vdwg.mxu0
        %377 = vst [vmem:[%s218] sm:$0xff] %v354
        %378 = vst [vmem:[%s218 + $0x8] sm:$0xff] %v357
        %379 = vst [vmem:[%s218 + $0x10] sm:$0xff] %v360
        %380 = vst [vmem:[%s218 + $0x18] sm:$0xff] %v363
        %381 = vst [vmem:[%s218 + $0x20] sm:$0xff] %v366
        %382 = vst [vmem:[%s218 + $0x28] sm:$0xff] %v369
        %383 = vst [vmem:[%s218 + $0x30] sm:$0xff] %v372
        %384 = vst [vmem:[%s218 + $0x38] sm:$0xff] %v375
        %v385 = vld [vmem:[%s223 + $0x40] sm:$0xff]
        %v386 = vld [vmem:[%s223 + $0x48] sm:$0xff]
        %v387 = vld [vmem:[%s223 + $0x50] sm:$0xff]
        %v388 = vld [vmem:[%s223 + $0x58] sm:$0xff]
        %v389 = vld [vmem:[%s223 + $0x60] sm:$0xff]
        %v390 = vld [vmem:[%s223 + $0x68] sm:$0xff]
        %v391 = vld [vmem:[%s223 + $0x70] sm:$0xff]
        %v392 = vld [vmem:[%s223 + $0x78] sm:$0xff]
        %v393 = vld [vmem:[%s1] sm:$0xff]
        %v394 = vld [vmem:[%s1 + $0x8] sm:$0xff]
        %v395 = vld [vmem:[%s1 + $0x10] sm:$0xff]
        %v396 = vld [vmem:[%s1 + $0x18] sm:$0xff]
        %v397 = vld [vmem:[%s2] sm:$0x1]
        %v399 = vperm.slane %v397, 0
        %v402 = vsel %vm242, %v385, 0
        %v405 = vsel %vm242, %v386, 0
        %v408 = vsel %vm242, %v387, 0
        %v411 = vsel %vm242, %v388, 0
        %v414 = vsel %vm242, %v389, 0
        %v417 = vsel %vm242, %v390, 0
        %v420 = vsel %vm242, %v391, 0
        %v423 = vsel %vm242, %v392, 0
        %425 = vmatpush.msra.mxu0 0.0
        %426 = vmatpush.msra.mxu0 0.0
        %427 = vmatpush.msra.mxu0 0.0
        %428 = vmatpush.msra.mxu0 0.0
        %429 = vmatpush.msra.mxu0 0.0
        %430 = vmatpush.msra.mxu0 0.0
        %431 = vmatpush.msra.mxu0 0.0
        %432 = vmatpush.msra.mxu0 0.0
        %433 = vmatpush.msra.mxu0 0.0
        %434 = vmatpush.msra.mxu0 0.0
        %435 = vmatpush.msra.mxu0 0.0
        %436 = vmatpush.msra.mxu0 0.0
        %437 = vmatpush.msra.mxu0 %v396
        %438 = vmatpush.msra.mxu0 %v395
        %439 = vmatpush.msra.mxu0 %v394
        %440 = vmatpush.msra.mxu0 %v393
        %441 = vmatmul.f32.gmra.mxu0 %v402
        %v442 = vpop.f32.mrf.mxu0
        %v443 = vadd.f32 %v399, %v442
        %444 = vmatmul.f32.gmra.mxu0 %v405
        %v445 = vpop.f32.mrf.mxu0
        %v446 = vadd.f32 %v399, %v445
        %447 = vmatmul.f32.gmra.mxu0 %v408
        %v448 = vpop.f32.mrf.mxu0
        %v449 = vadd.f32 %v399, %v448
        %450 = vmatmul.f32.gmra.mxu0 %v411
        %v451 = vpop.f32.mrf.mxu0
        %v452 = vadd.f32 %v399, %v451
        %453 = vmatmul.f32.gmra.mxu0 %v414
        %v454 = vpop.f32.mrf.mxu0
        %v455 = vadd.f32 %v399, %v454
        %456 = vmatmul.f32.gmra.mxu0 %v417
        %v457 = vpop.f32.mrf.mxu0
        %v458 = vadd.f32 %v399, %v457
        %459 = vmatmul.f32.gmra.mxu0 %v420
        %v460 = vpop.f32.mrf.mxu0
        %v461 = vadd.f32 %v399, %v460
        %462 = vmatmul.f32.gmra.mxu0 %v423
        %v463 = vpop.f32.mrf.mxu0
        %v464 = vadd.f32 %v399, %v463
        %465 = vdwg.mxu0
        %v466 = vtanh.pop %v443
        %v467 = vtanh.pop %v446
        %v468 = vtanh.pop %v449
        %v469 = vtanh.pop %v452
        %v470 = vtanh.pop %v455
        %v471 = vtanh.pop %v458
        %v472 = vtanh.pop %v461
        %v473 = vtanh.pop %v464
        %v474 = vld [vmem:[%s3] sm:$0xff]
        %v475 = vld [vmem:[%s3 + $0x8] sm:$0xff]
        %v476 = vld [vmem:[%s3 + $0x10] sm:$0xff]
        %v477 = vld [vmem:[%s3 + $0x18] sm:$0xff]
        %v478 = vld [vmem:[%s3 + $0x20] sm:$0xff]
        %v479 = vld [vmem:[%s3 + $0x28] sm:$0xff]
        %v480 = vld [vmem:[%s3 + $0x30] sm:$0xff]
        %v481 = vld [vmem:[%s3 + $0x38] sm:$0xff]
        %v482 = vld [vmem:[%s3 + $0x40] sm:$0xff]
        %v483 = vld [vmem:[%s3 + $0x48] sm:$0xff]
        %v484 = vld [vmem:[%s3 + $0x50] sm:$0xff]
        %v485 = vld [vmem:[%s3 + $0x58] sm:$0xff]
        %v486 = vld [vmem:[%s3 + $0x60] sm:$0xff]
        %v487 = vld [vmem:[%s3 + $0x68] sm:$0xff]
        %v488 = vld [vmem:[%s3 + $0x70] sm:$0xff]
        %v489 = vld [vmem:[%s3 + $0x78] sm:$0xff]
        %v490 = vld [vmem:[%s4] sm:$0x1]
        %v492 = vperm.slane %v490, 0
        %494 = vmatpush.msra.mxu0 %v489
        %495 = vmatpush.msra.mxu0 %v488
        %496 = vmatpush.msra.mxu0 %v487
        %497 = vmatpush.msra.mxu0 %v486
        %498 = vmatpush.msra.mxu0 %v485
        %499 = vmatpush.msra.mxu0 %v484
        %500 = vmatpush.msra.mxu0 %v483
        %501 = vmatpush.msra.mxu0 %v482
        %502 = vmatpush.msra.mxu0 %v481
        %503 = vmatpush.msra.mxu0 %v480
        %504 = vmatpush.msra.mxu0 %v479
        %505 = vmatpush.msra.mxu0 %v478
        %506 = vmatpush.msra.mxu0 %v477
        %507 = vmatpush.msra.mxu0 %v476
        %508 = vmatpush.msra.mxu0 %v475
        %509 = vmatpush.msra.mxu0 %v474
        %510 = vmatmul.f32.gmra.mxu0 %v466
        %v511 = vpop.f32.mrf.mxu0
        %v512 = vadd.f32 %v492, %v511
        %513 = vmatmul.f32.gmra.mxu0 %v467
        %v514 = vpop.f32.mrf.mxu0
        %v515 = vadd.f32 %v492, %v514
        %516 = vmatmul.f32.gmra.mxu0 %v468
        %v517 = vpop.f32.mrf.mxu0
        %v518 = vadd.f32 %v492, %v517
        %519 = vmatmul.f32.gmra.mxu0 %v469
        %v520 = vpop.f32.mrf.mxu0
        %v521 = vadd.f32 %v492, %v520
        %522 = vmatmul.f32.gmra.mxu0 %v470
        %v523 = vpop.f32.mrf.mxu0
        %v524 = vadd.f32 %v492, %v523
        %525 = vmatmul.f32.gmra.mxu0 %v471
        %v526 = vpop.f32.mrf.mxu0
        %v527 = vadd.f32 %v492, %v526
        %528 = vmatmul.f32.gmra.mxu0 %v472
        %v529 = vpop.f32.mrf.mxu0
        %v530 = vadd.f32 %v492, %v529
        %531 = vmatmul.f32.gmra.mxu0 %v473
        %v532 = vpop.f32.mrf.mxu0
        %v533 = vadd.f32 %v492, %v532
        %534 = vdwg.mxu0
        %535 = vst [vmem:[%s218 + $0x40] sm:$0xff] %v512
        %536 = vst [vmem:[%s218 + $0x48] sm:$0xff] %v515
        %537 = vst [vmem:[%s218 + $0x50] sm:$0xff] %v518
        %538 = vst [vmem:[%s218 + $0x58] sm:$0xff] %v521
        %539 = vst [vmem:[%s218 + $0x60] sm:$0xff] %v524
        %540 = vst [vmem:[%s218 + $0x68] sm:$0xff] %v527
        %541 = vst [vmem:[%s218 + $0x70] sm:$0xff] %v530
        %542 = vst [vmem:[%s218 + $0x78] sm:$0xff] %v533
        %s543 = sand.u32 %s137, 1
        %s544 = scalar_lea.sflag [#allocation3], %s543
        %s545 = sand.u32 %s137, 1
        %s546 = smul.addr %s545, 128
        %s547 = scalar_lea.vmem [#allocation2], %s546
        // Predicated region
        $region41: #{tpu_custom_call.1} parent=39 // pred_check
          %p548 = pneg %p147
        $region42: #{tpu_custom_call.1} parent=39 // pred_check_branch
          %550 = sbr.rel (%p548) target = $region44
        $region43: #{tpu_custom_call.1} parent=39 // pred_region
          %s551 = smul.u32 16, %s19
          %553 = vsyncadd %s544, 0
          %s554 = smul.addr %s551, 8
          %s555 = scalar_lea.hbm %s5, %s554
          %s556 = sshll.u32 %s547, 4
          %s557 = int_to_ptr.vmem [resolvable:$true] %s556
          %s558 = sshll.u32 %s555, 4
          %s559 = int_to_ptr.hbm [resolvable:$true] %s558
          %564 = dma.vmem_to_hbm [thread:$0]  %s557, 2048, %s559, %s544, 128, 128, 8
        $region44: #{tpu_custom_call.1} parent=39 // pred_fallthru
          _
      $region40: #{tpu_custom_call.1} parent=5 // pred_fallthru
        _
      %p565 = scmp.le.s32.totalorder 2, %s14
      // Predicated region
      $region45: #{tpu_custom_call.1} parent=5 // pred_check
        %p566 = pneg %p565
      $region46: #{tpu_custom_call.1} parent=5 // pred_check_branch
        %568 = sbr.rel (%p566) target = $region48
      $region47: #{tpu_custom_call.1} parent=5 // pred_region
        %s569 = ssub.s32 %s14, 2
        // Predicated region
        $region49: #{tpu_custom_call.1} parent=47 // pred_check
          %p570 = pneg %p153
        $region50: #{tpu_custom_call.1} parent=47 // pred_check_branch
          %572 = sbr.rel (%p570) target = $region52
        $region51: #{tpu_custom_call.1} parent=47 // pred_region
          %s573 = sand.u32 %s138, 1
          %s574 = scalar_lea.sflag [#allocation3], %s573
          %s575 = sand.u32 %s138, 1
          %s576 = smul.addr %s575, 128
          %s577 = scalar_lea.vmem [#allocation2], %s576
          %579 = dma.done %s574, 2048
        $region52: #{tpu_custom_call.1} parent=47 // pred_fallthru
          _
      $region48: #{tpu_custom_call.1} parent=5 // pred_fallthru
        _
    $region6: #{tpu_custom_call.1} parent=1 // loop_footer
      %s18 = sadd.s32 1, %s14
    $region7: #{tpu_custom_call.1} parent=1 // loop_footer_branch
      %13 = sbr.rel target = $region3
    $region8: #{tpu_custom_call.1} parent=1 // loop_exit
      _
    %580 = vsyncpa [#allocation3], 1
    %s581 = scalar_lea.sflag [#allocation3], 1
    %582 = vsyncpa %s581, 1

// kernel: tpu_custom_call.1
$region0: #{tpu_custom_call.1}
  #allocation0 [shape = 'u32[]', space=smem, size = 0x4, offset = 0x4, fixed_abs, tag = 'smem constant byte address 0x4 - core index']
  #allocation1 [shape = 'u32[72,128]{1,0:T(1,128)}', space=vmem, size = 0x9000, scoped, tag = 'internal scratch']
  %s0 = inlined_call_operand.vmem [shape: f32[256,32], index: 0, kind: input, shape index: {}]
  %s1 = inlined_call_operand.vmem [shape: f32[32,128], index: 1, kind: input, shape index: {}]
  %s2 = inlined_call_operand.vmem [shape: f32[1,128], index: 2, kind: input, shape index: {}]
  %s3 = inlined_call_operand.vmem [shape: f32[128,128], index: 3, kind: input, shape index: {}]
  %s4 = inlined_call_operand.vmem [shape: f32[1,128], index: 4, kind: input, shape index: {}]
  %s5 = inlined_call_operand.hbm [shape: f32[256,128], index: 5, kind: output, shape index: {}]
  %s6 = sld [smem:[#allocation0]]
  $region53: #{tpu_custom_call.1} parent=0
    _
  %s8 = ssub.s32 1, %s6
  %s9 = scalar_select 0, %s8, %s6
  $region1: #{tpu_custom_call.1} parent=0
    #allocation2 [shape = 'u8[131072]{0}', space=vmem, size = 0x20000, scoped, tag = 'output window, operand 0']
    #allocation3 [shape = 's32[2]{0}', space=sflag, size = 0x8, scoped, tag = 'scoped memory for tpu_custom_call.1']
    %10 = vsyncpa [#allocation3], 0
    %s11 = scalar_lea.sflag [#allocation3], 1
    %12 = vsyncpa %s11, 0
    loop: start=0, step=1, limit=4
    $region2: #{tpu_custom_call.1} parent=1 // loop_pre_header
      _
    $region3: #{tpu_custom_call.1} parent=1 // loop_header
      %s14 = sphi 0, %s18
      %p15 = scmp.ge.s32.totalorder %s14, 4
      %s24 = sphi 0, %s26
      %s27 = sphi 0, %s24
      %s28 = sphi 0, %s27
      %s44 = sphi 0, %s28
      %s48 = sphi 0, %s48
      %s50 = sphi 0, %s48
      %s51 = sphi 0, %s50
      %s65 = sphi 0, %s51
      %s69 = sphi 0, %s69
      %s71 = sphi 0, %s69
      %s72 = sphi 0, %s71
      %s86 = sphi 0, %s72
      %s90 = sphi 0, %s90
      %s92 = sphi 0, %s90
      %s93 = sphi 0, %s92
      %s107 = sphi 0, %s93
      %s111 = sphi 0, %s111
      %s113 = sphi 0, %s111
      %s114 = sphi 0, %s113
      %s128 = sphi 0, %s114
      %s134 = sphi 0, %s136
      %s137 = sphi 0, %s134
      %s138 = sphi 0, %s137
      %s154 = sphi 0, %s138
    $region4: #{tpu_custom_call.1} parent=1 // loop_header_branch
      %17 = sbr.rel (%p15) target = $region8
    $region5: #{tpu_custom_call.1} parent=1 // loop_body
      %s19 = ssub.s32 %s14, 1
      %s20 = ssub.s32 %s14, 2
      %s21 = sadd.s32 %s14, 1
      %s22 = ssub.s32 %s14, %s21
      %p23 = scmp.eq.s32.totalorder %s22, 0
      %s25 = sadd.s32 %s24, 1
      %s26 = scalar_select %p23, %s24, %s25
      %p29 = pneg %p23
      %p30 = scmp.eq.s32.totalorder %s14, 1
      %p31 = por %p29, %p30
      %p32 = scmp.ne.s32.totalorder %s24, %s27
      %p33 = scmp.eq.s32.totalorder %s14, 0
      %p34 = por %p32, %p33
      %p35 = scmp.ne.s32.totalorder %s24, %s27
      %p36 = scmp.eq.s32.totalorder %s19, 1
      %p37 = por %p35, %p36
      %p38 = scmp.ne.s32.totalorder %s27, %s28
      %p39 = scmp.eq.s32.totalorder %s19, 0
      %p40 = por %p38, %p39
      %p41 = scmp.ne.s32.totalorder %s27, %s28
      %p42 = scmp.eq.s32.totalorder %s20, 1
      %p43 = por %p41, %p42
      %p45 = scmp.ne.s32.totalorder %s28, %s44
      %p46 = scmp.eq.s32.totalorder %s20, 0
      %p47 = por %p45, %p46
      %s49 = sadd.s32 %s48, 1
      %p52 = scmp.eq.s32.totalorder %s14, 1
      %p53 = scmp.ne.s32.totalorder %s48, %s50
      %p54 = scmp.eq.s32.totalorder %s14, 0
      %p55 = por %p53, %p54
      %p56 = scmp.ne.s32.totalorder %s48, %s50
      %p57 = scmp.eq.s32.totalorder %s19, 1
      %p58 = por %p56, %p57
      %p59 = scmp.ne.s32.totalorder %s50, %s51
      %p60 = scmp.eq.s32.totalorder %s19, 0
      %p61 = por %p59, %p60
      %p62 = scmp.ne.s32.totalorder %s50, %s51
      %p63 = scmp.eq.s32.totalorder %s20, 1
      %p64 = por %p62, %p63
      %p66 = scmp.ne.s32.totalorder %s51, %s65
      %p67 = scmp.eq.s32.totalorder %s20, 0
      %p68 = por %p66, %p67
      %s70 = sadd.s32 %s69, 1
      %p73 = scmp.eq.s32.totalorder %s14, 1
      %p74 = scmp.ne.s32.totalorder %s69, %s71
      %p75 = scmp.eq.s32.totalorder %s14, 0
      %p76 = por %p74, %p75
      %p77 = scmp.ne.s32.totalorder %s69, %s71
      %p78 = scmp.eq.s32.totalorder %s19, 1
      %p79 = por %p77, %p78
      %p80 = scmp.ne.s32.totalorder %s71, %s72
      %p81 = scmp.eq.s32.totalorder %s19, 0
      %p82 = por %p80, %p81
      %p83 = scmp.ne.s32.totalorder %s71, %s72
      %p84 = scmp.eq.s32.totalorder %s20, 1
      %p85 = por %p83, %p84
      %p87 = scmp.ne.s32.totalorder %s72, %s86
      %p88 = scmp.eq.s32.totalorder %s20, 0
      %p89 = por %p87, %p88
      %s91 = sadd.s32 %s90, 1
      %p94 = scmp.eq.s32.totalorder %s14, 1
      %p95 = scmp.ne.s32.totalorder %s90, %s92
      %p96 = scmp.eq.s32.totalorder %s14, 0
      %p97 = por %p95, %p96
      %p98 = scmp.ne.s32.totalorder %s90, %s92
      %p99 = scmp.eq.s32.totalorder %s19, 1
      %p100 = por %p98, %p99
      %p101 = scmp.ne.s32.totalorder %s92, %s93
      %p102 = scmp.eq.s32.totalorder %s19, 0
      %p103 = por %p101, %p102
      %p104 = scmp.ne.s32.totalorder %s92, %s93
      %p105 = scmp.eq.s32.totalorder %s20, 1
      %p106 = por %p104, %p105
      %p108 = scmp.ne.s32.totalorder %s93, %s107
      %p109 = scmp.eq.s32.totalorder %s20, 0
      %p110 = por %p108, %p109
      %s112 = sadd.s32 %s111, 1
      %p115 = scmp.eq.s32.totalorder %s14, 1
      %p116 = scmp.ne.s32.totalorder %s111, %s113
      %p117 = scmp.eq.s32.totalorder %s14, 0
      %p118 = por %p116, %p117
      %p119 = scmp.ne.s32.totalorder %s111, %s113
      %p120 = scmp.eq.s32.totalorder %s19, 1
      %p121 = por %p119, %p120
      %p122 = scmp.ne.s32.totalorder %s113, %s114
      %p123 = scmp.eq.s32.totalorder %s19, 0
      %p124 = por %p122, %p123
      %p125 = scmp.ne.s32.totalorder %s113, %s114
      %p126 = scmp.eq.s32.totalorder %s20, 1
      %p127 = por %p125, %p126
      %p129 = scmp.ne.s32.totalorder %s114, %s128
      %p130 = scmp.eq.s32.totalorder %s20, 0
      %p131 = por %p129, %p130
      %s132 = ssub.s32 %s14, %s21
      %p133 = scmp.eq.s32.totalorder %s132, 0
      %s135 = sadd.s32 %s134, 1
      %s136 = scalar_select %p133, %s134, %s135
      %p139 = pneg %p133
      %p140 = scmp.eq.s32.totalorder %s14, 1
      %p141 = por %p139, %p140
      %p142 = scmp.ne.s32.totalorder %s134, %s137
      %p143 = scmp.eq.s32.totalorder %s14, 0
      %p144 = por %p142, %p143
      %p145 = scmp.ne.s32.totalorder %s134, %s137
      %p146 = scmp.eq.s32.totalorder %s19, 1
      %p147 = por %p145, %p146
      %p148 = scmp.ne.s32.totalorder %s137, %s138
      %p149 = scmp.eq.s32.totalorder %s19, 0
      %p150 = por %p148, %p149
      %p151 = scmp.ne.s32.totalorder %s137, %s138
      %p152 = scmp.eq.s32.totalorder %s20, 1
      %p153 = por %p151, %p152
      %p155 = scmp.ne.s32.totalorder %s138, %s154
      %p156 = scmp.eq.s32.totalorder %s20, 0
      %p157 = por %p155, %p156
      %p158 = scmp.le.s32.totalorder 1, %s14
      %p159 = scmp.lt.s32.totalorder %s14, 3
      %p160 = pnand %p158, %p159
      %p161 = pneg %p160
      // Predicated region
      $region9: #{tpu_custom_call.1} parent=5 // pred_check
        _
      $region10: #{tpu_custom_call.1} parent=5 // pred_check_branch
        %163 = sbr.rel (%p160) target = $region12
      $region11: #{tpu_custom_call.1} parent=5 // pred_region
        %s164 = ssub.s32 %s14, 1
        // Predicated region
        $region13: #{tpu_custom_call.1} parent=11 // pred_check
          %p165 = pneg %p61
        $region14: #{tpu_custom_call.1} parent=11 // pred_check_branch
          %167 = sbr.rel (%p165) target = $region16
        $region15: #{tpu_custom_call.1} parent=11 // pred_region
          _
        $region16: #{tpu_custom_call.1} parent=11 // pred_fallthru
          _
        // Predicated region
        $region17: #{tpu_custom_call.1} parent=11 // pred_check
          %p168 = pneg %p82
        $region18: #{tpu_custom_call.1} parent=11 // pred_check_branch
          %170 = sbr.rel (%p168) target = $region20
        $region19: #{tpu_custom_call.1} parent=11 // pred_region
          _
        $region20: #{tpu_custom_call.1} parent=11 // pred_fallthru
          _
        // Predicated region
        $region21: #{tpu_custom_call.1} parent=11 // pred_check
          %p171 = pneg %p103
        $region22: #{tpu_custom_call.1} parent=11 // pred_check_branch
          %173 = sbr.rel (%p171) target = $region24
        $region23: #{tpu_custom_call.1} parent=11 // pred_region
          _
        $region24: #{tpu_custom_call.1} parent=11 // pred_fallthru
          _
        // Predicated region
        $region25: #{tpu_custom_call.1} parent=11 // pred_check
          %p174 = pneg %p124
        $region26: #{tpu_custom_call.1} parent=11 // pred_check_branch
          %176 = sbr.rel (%p174) target = $region28
        $region27: #{tpu_custom_call.1} parent=11 // pred_region
          _
        $region28: #{tpu_custom_call.1} parent=11 // pred_fallthru
          _
      $region12: #{tpu_custom_call.1} parent=5 // pred_fallthru
        _
      %p177 = scmp.lt.s32.totalorder %s14, 2
      // Predicated region
      $region29: #{tpu_custom_call.1} parent=5 // pred_check
        %p178 = pneg %p177
      $region30: #{tpu_custom_call.1} parent=5 // pred_check_branch
        %180 = sbr.rel (%p178) target = $region32
      $region31: #{tpu_custom_call.1} parent=5 // pred_region
        // Predicated region
        $region33: #{tpu_custom_call.1} parent=31 // pred_check
          %p181 = pneg %p34
        $region34: #{tpu_custom_call.1} parent=31 // pred_check_branch
          %183 = sbr.rel (%p181) target = $region36
        $region35: #{tpu_custom_call.1} parent=31 // pred_region
          %s184 = smul.u32 16, %s14
          %p185 = scmp.lt.s32.totalorder %s184, 31
          %s186 = scalar_select %p185, %s184, 31
          %s187 = smul.addr %s186, 8
          %s188 = scalar_lea.vmem %s0, %s187
          %s189 = smul.u32 16, %s14
        $region36: #{tpu_custom_call.1} parent=31 // pred_fallthru
          _
      $region32: #{tpu_custom_call.1} parent=5 // pred_fallthru
        _
      %p190 = scmp.le.s32.totalorder 1, %s14
      %p191 = scmp.lt.s32.totalorder %s14, 3
      %p192 = pnand %p190, %p191
      %p193 = pneg %p192
      // Predicated region
      $region37: #{tpu_custom_call.1} parent=5 // pred_check
        _
      $region38: #{tpu_custom_call.1} parent=5 // pred_check_branch
        %195 = sbr.rel (%p192) target = $region40
      $region39: #{tpu_custom_call.1} parent=5 // pred_region
        %s196 = ssub.s32 %s14, 1
        %s197 = smul.u32 16, %s19
        %p198 = scmp.lt.s32.totalorder %s197, 31
        %s199 = scalar_select %p198, %s197, 31
        %s200 = smul.addr %s199, 8
        %s201 = scalar_lea.vmem %s0, %s200
        %p202 = pneg %p40
        %p203 = pneg %p37
        %p204 = pneg %p61
        %p205 = pneg %p58
        %p206 = pneg %p82
        %p207 = pneg %p79
        %p208 = pneg %p103
        %p209 = pneg %p100
        %p210 = pneg %p124
        %p211 = pneg %p121
        %p212 = pneg %p150
        %p213 = pneg %p147
        %s214 = sand.u32 %s137, 1
        %s215 = scalar_lea.sflag [#allocation3], %s214
        %s216 = sand.u32 %s137, 1
        %s217 = smul.addr %s216, 128
        %s218 = scalar_lea.vmem [#allocation2], %s217
        %s219 = smul.u32 16, %s19
        %p220 = scmp.lt.s32.totalorder %s219, 31
        %s221 = scalar_select %p220, %s219, 31
        %s222 = smul.addr %s221, 8
        %s223 = scalar_lea.vmem %s0, %s222
        %s224 = smul.u32 16, %s19
        %s225 = smul.u32 16, %s19
        %v226 = vld [vmem:[%s223] sm:$0xff]
        %v227 = vld [vmem:[%s223 + $0x8] sm:$0xff]
        %v228 = vld [vmem:[%s223 + $0x10] sm:$0xff]
        %v229 = vld [vmem:[%s223 + $0x18] sm:$0xff]
        %v230 = vld [vmem:[%s223 + $0x20] sm:$0xff]
        %v231 = vld [vmem:[%s223 + $0x28] sm:$0xff]
        %v232 = vld [vmem:[%s223 + $0x30] sm:$0xff]
        %v233 = vld [vmem:[%s223 + $0x38] sm:$0xff]
        %v234 = vld [vmem:[%s1] sm:$0xff]
        %v235 = vld [vmem:[%s1 + $0x8] sm:$0xff]
        %v236 = vld [vmem:[%s1 + $0x10] sm:$0xff]
        %v237 = vld [vmem:[%s1 + $0x18] sm:$0xff]
        %v238 = vld [vmem:[%s2] sm:$0x1]
        %v240 = vperm.slane %v238, 0
        %vm242 = vcmask 261120
        %v244 = vsel %vm242, %v226, 0
        %v247 = vsel %vm242, %v227, 0
        %v250 = vsel %vm242, %v228, 0
        %v253 = vsel %vm242, %v229, 0
        %v256 = vsel %vm242, %v230, 0
        %v259 = vsel %vm242, %v231, 0
        %v262 = vsel %vm242, %v232, 0
        %v265 = vsel %vm242, %v233, 0
        %267 = vmatpush.msra.mxu0 0.0
        %268 = vmatpush.msra.mxu0 0.0
        %269 = vmatpush.msra.mxu0 0.0
        %270 = vmatpush.msra.mxu0 0.0
        %271 = vmatpush.msra.mxu0 0.0
        %272 = vmatpush.msra.mxu0 0.0
        %273 = vmatpush.msra.mxu0 0.0
        %274 = vmatpush.msra.mxu0 0.0
        %275 = vmatpush.msra.mxu0 0.0
        %276 = vmatpush.msra.mxu0 0.0
        %277 = vmatpush.msra.mxu0 0.0
        %278 = vmatpush.msra.mxu0 0.0
        %279 = vmatpush.msra.mxu0 %v237
        %280 = vmatpush.msra.mxu0 %v236
        %281 = vmatpush.msra.mxu0 %v235
        %282 = vmatpush.msra.mxu0 %v234
        %283 = vmatmul.f32.gmra.mxu0 %v244
        %v284 = vpop.f32.mrf.mxu0
        %v285 = vadd.f32 %v240, %v284
        %286 = vmatmul.f32.gmra.mxu0 %v247
        %v287 = vpop.f32.mrf.mxu0
        %v288 = vadd.f32 %v240, %v287
        %289 = vmatmul.f32.gmra.mxu0 %v250
        %v290 = vpop.f32.mrf.mxu0
        %v291 = vadd.f32 %v240, %v290
        %292 = vmatmul.f32.gmra.mxu0 %v253
        %v293 = vpop.f32.mrf.mxu0
        %v294 = vadd.f32 %v240, %v293
        %295 = vmatmul.f32.gmra.mxu0 %v256
        %v296 = vpop.f32.mrf.mxu0
        %v297 = vadd.f32 %v240, %v296
        %298 = vmatmul.f32.gmra.mxu0 %v259
        %v299 = vpop.f32.mrf.mxu0
        %v300 = vadd.f32 %v240, %v299
        %301 = vmatmul.f32.gmra.mxu0 %v262
        %v302 = vpop.f32.mrf.mxu0
        %v303 = vadd.f32 %v240, %v302
        %304 = vmatmul.f32.gmra.mxu0 %v265
        %v305 = vpop.f32.mrf.mxu0
        %v306 = vadd.f32 %v240, %v305
        %307 = vdwg.mxu0
        %v308 = vtanh.pop %v285
        %v309 = vtanh.pop %v288
        %v310 = vtanh.pop %v291
        %v311 = vtanh.pop %v294
        %v312 = vtanh.pop %v297
        %v313 = vtanh.pop %v300
        %v314 = vtanh.pop %v303
        %v315 = vtanh.pop %v306
        %v316 = vld [vmem:[%s3] sm:$0xff]
        %v317 = vld [vmem:[%s3 + $0x8] sm:$0xff]
        %v318 = vld [vmem:[%s3 + $0x10] sm:$0xff]
        %v319 = vld [vmem:[%s3 + $0x18] sm:$0xff]
        %v320 = vld [vmem:[%s3 + $0x20] sm:$0xff]
        %v321 = vld [vmem:[%s3 + $0x28] sm:$0xff]
        %v322 = vld [vmem:[%s3 + $0x30] sm:$0xff]
        %v323 = vld [vmem:[%s3 + $0x38] sm:$0xff]
        %v324 = vld [vmem:[%s3 + $0x40] sm:$0xff]
        %v325 = vld [vmem:[%s3 + $0x48] sm:$0xff]
        %v326 = vld [vmem:[%s3 + $0x50] sm:$0xff]
        %v327 = vld [vmem:[%s3 + $0x58] sm:$0xff]
        %v328 = vld [vmem:[%s3 + $0x60] sm:$0xff]
        %v329 = vld [vmem:[%s3 + $0x68] sm:$0xff]
        %v330 = vld [vmem:[%s3 + $0x70] sm:$0xff]
        %v331 = vld [vmem:[%s3 + $0x78] sm:$0xff]
        %v332 = vld [vmem:[%s4] sm:$0x1]
        %v334 = vperm.slane %v332, 0
        %336 = vmatpush.msra.mxu0 %v331
        %337 = vmatpush.msra.mxu0 %v330
        %338 = vmatpush.msra.mxu0 %v329
        %339 = vmatpush.msra.mxu0 %v328
        %340 = vmatpush.msra.mxu0 %v327
        %341 = vmatpush.msra.mxu0 %v326
        %342 = vmatpush.msra.mxu0 %v325
        %343 = vmatpush.msra.mxu0 %v324
        %344 = vmatpush.msra.mxu0 %v323
        %345 = vmatpush.msra.mxu0 %v322
        %346 = vmatpush.msra.mxu0 %v321
        %347 = vmatpush.msra.mxu0 %v320
        %348 = vmatpush.msra.mxu0 %v319
        %349 = vmatpush.msra.mxu0 %v318
        %350 = vmatpush.msra.mxu0 %v317
        %351 = vmatpush.msra.mxu0 %v316
        %352 = vmatmul.f32.gmra.mxu0 %v308
        %v353 = vpop.f32.mrf.mxu0
        %v354 = vadd.f32 %v334, %v353
        %355 = vmatmul.f32.gmra.mxu0 %v309
        %v356 = vpop.f32.mrf.mxu0
        %v357 = vadd.f32 %v334, %v356
        %358 = vmatmul.f32.gmra.mxu0 %v310
        %v359 = vpop.f32.mrf.mxu0
        %v360 = vadd.f32 %v334, %v359
        %361 = vmatmul.f32.gmra.mxu0 %v311
        %v362 = vpop.f32.mrf.mxu0
        %v363 = vadd.f32 %v334, %v362
        %364 = vmatmul.f32.gmra.mxu0 %v312
        %v365 = vpop.f32.mrf.mxu0
        %v366 = vadd.f32 %v334, %v365
        %367 = vmatmul.f32.gmra.mxu0 %v313
        %v368 = vpop.f32.mrf.mxu0
        %v369 = vadd.f32 %v334, %v368
        %370 = vmatmul.f32.gmra.mxu0 %v314
        %v371 = vpop.f32.mrf.mxu0
        %v372 = vadd.f32 %v334, %v371
        %373 = vmatmul.f32.gmra.mxu0 %v315
        %v374 = vpop.f32.mrf.mxu0
        %v375 = vadd.f32 %v334, %v374
        %376 = vdwg.mxu0
        %377 = vst [vmem:[%s218] sm:$0xff] %v354
        %378 = vst [vmem:[%s218 + $0x8] sm:$0xff] %v357
        %379 = vst [vmem:[%s218 + $0x10] sm:$0xff] %v360
        %380 = vst [vmem:[%s218 + $0x18] sm:$0xff] %v363
        %381 = vst [vmem:[%s218 + $0x20] sm:$0xff] %v366
        %382 = vst [vmem:[%s218 + $0x28] sm:$0xff] %v369
        %383 = vst [vmem:[%s218 + $0x30] sm:$0xff] %v372
        %384 = vst [vmem:[%s218 + $0x38] sm:$0xff] %v375
        %v385 = vld [vmem:[%s223 + $0x40] sm:$0xff]
        %v386 = vld [vmem:[%s223 + $0x48] sm:$0xff]
        %v387 = vld [vmem:[%s223 + $0x50] sm:$0xff]
        %v388 = vld [vmem:[%s223 + $0x58] sm:$0xff]
        %v389 = vld [vmem:[%s223 + $0x60] sm:$0xff]
        %v390 = vld [vmem:[%s223 + $0x68] sm:$0xff]
        %v391 = vld [vmem:[%s223 + $0x70] sm:$0xff]
        %v392 = vld [vmem:[%s223 + $0x78] sm:$0xff]
        %v393 = vld [vmem:[%s1] sm:$0xff]
        %v394 = vld [vmem:[%s1 + $0x8] sm:$0xff]
        %v395 = vld [vmem:[%s1 + $0x10] sm:$0xff]
        %v396 = vld [vmem:[%s1 + $0x18] sm:$0xff]
        %v397 = vld [vmem:[%s2] sm:$0x1]
        %v399 = vperm.slane %v397, 0
        %v402 = vsel %vm242, %v385, 0
        %v405 = vsel %vm242, %v386, 0
        %v408 = vsel %vm242, %v387, 0
        %v411 = vsel %vm242, %v388, 0
        %v414 = vsel %vm242, %v389, 0
        %v417 = vsel %vm242, %v390, 0
        %v420 = vsel %vm242, %v391, 0
        %v423 = vsel %vm242, %v392, 0
        %425 = vmatpush.msra.mxu0 0.0
        %426 = vmatpush.msra.mxu0 0.0
        %427 = vmatpush.msra.mxu0 0.0
        %428 = vmatpush.msra.mxu0 0.0
        %429 = vmatpush.msra.mxu0 0.0
        %430 = vmatpush.msra.mxu0 0.0
        %431 = vmatpush.msra.mxu0 0.0
        %432 = vmatpush.msra.mxu0 0.0
        %433 = vmatpush.msra.mxu0 0.0
        %434 = vmatpush.msra.mxu0 0.0
        %435 = vmatpush.msra.mxu0 0.0
        %436 = vmatpush.msra.mxu0 0.0
        %437 = vmatpush.msra.mxu0 %v396
        %438 = vmatpush.msra.mxu0 %v395
        %439 = vmatpush.msra.mxu0 %v394
        %440 = vmatpush.msra.mxu0 %v393
        %441 = vmatmul.f32.gmra.mxu0 %v402
        %v442 = vpop.f32.mrf.mxu0
        %v443 = vadd.f32 %v399, %v442
        %444 = vmatmul.f32.gmra.mxu0 %v405
        %v445 = vpop.f32.mrf.mxu0
        %v446 = vadd.f32 %v399, %v445
        %447 = vmatmul.f32.gmra.mxu0 %v408
        %v448 = vpop.f32.mrf.mxu0
        %v449 = vadd.f32 %v399, %v448
        %450 = vmatmul.f32.gmra.mxu0 %v411
        %v451 = vpop.f32.mrf.mxu0
        %v452 = vadd.f32 %v399, %v451
        %453 = vmatmul.f32.gmra.mxu0 %v414
        %v454 = vpop.f32.mrf.mxu0
        %v455 = vadd.f32 %v399, %v454
        %456 = vmatmul.f32.gmra.mxu0 %v417
        %v457 = vpop.f32.mrf.mxu0
        %v458 = vadd.f32 %v399, %v457
        %459 = vmatmul.f32.gmra.mxu0 %v420
        %v460 = vpop.f32.mrf.mxu0
        %v461 = vadd.f32 %v399, %v460
        %462 = vmatmul.f32.gmra.mxu0 %v423
        %v463 = vpop.f32.mrf.mxu0
        %v464 = vadd.f32 %v399, %v463
        %465 = vdwg.mxu0
        %v466 = vtanh.pop %v443
        %v467 = vtanh.pop %v446
        %v468 = vtanh.pop %v449
        %v469 = vtanh.pop %v452
        %v470 = vtanh.pop %v455
        %v471 = vtanh.pop %v458
        %v472 = vtanh.pop %v461
        %v473 = vtanh.pop %v464
        %v474 = vld [vmem:[%s3] sm:$0xff]
        %v475 = vld [vmem:[%s3 + $0x8] sm:$0xff]
        %v476 = vld [vmem:[%s3 + $0x10] sm:$0xff]
        %v477 = vld [vmem:[%s3 + $0x18] sm:$0xff]
        %v478 = vld [vmem:[%s3 + $0x20] sm:$0xff]
        %v479 = vld [vmem:[%s3 + $0x28] sm:$0xff]
        %v480 = vld [vmem:[%s3 + $0x30] sm:$0xff]
        %v481 = vld [vmem:[%s3 + $0x38] sm:$0xff]
        %v482 = vld [vmem:[%s3 + $0x40] sm:$0xff]
        %v483 = vld [vmem:[%s3 + $0x48] sm:$0xff]
        %v484 = vld [vmem:[%s3 + $0x50] sm:$0xff]
        %v485 = vld [vmem:[%s3 + $0x58] sm:$0xff]
        %v486 = vld [vmem:[%s3 + $0x60] sm:$0xff]
        %v487 = vld [vmem:[%s3 + $0x68] sm:$0xff]
        %v488 = vld [vmem:[%s3 + $0x70] sm:$0xff]
        %v489 = vld [vmem:[%s3 + $0x78] sm:$0xff]
        %v490 = vld [vmem:[%s4] sm:$0x1]
        %v492 = vperm.slane %v490, 0
        %494 = vmatpush.msra.mxu0 %v489
        %495 = vmatpush.msra.mxu0 %v488
        %496 = vmatpush.msra.mxu0 %v487
        %497 = vmatpush.msra.mxu0 %v486
        %498 = vmatpush.msra.mxu0 %v485
        %499 = vmatpush.msra.mxu0 %v484
        %500 = vmatpush.msra.mxu0 %v483
        %501 = vmatpush.msra.mxu0 %v482
        %502 = vmatpush.msra.mxu0 %v481
        %503 = vmatpush.msra.mxu0 %v480
        %504 = vmatpush.msra.mxu0 %v479
        %505 = vmatpush.msra.mxu0 %v478
        %506 = vmatpush.msra.mxu0 %v477
        %507 = vmatpush.msra.mxu0 %v476
        %508 = vmatpush.msra.mxu0 %v475
        %509 = vmatpush.msra.mxu0 %v474
        %510 = vmatmul.f32.gmra.mxu0 %v466
        %v511 = vpop.f32.mrf.mxu0
        %v512 = vadd.f32 %v492, %v511
        %513 = vmatmul.f32.gmra.mxu0 %v467
        %v514 = vpop.f32.mrf.mxu0
        %v515 = vadd.f32 %v492, %v514
        %516 = vmatmul.f32.gmra.mxu0 %v468
        %v517 = vpop.f32.mrf.mxu0
        %v518 = vadd.f32 %v492, %v517
        %519 = vmatmul.f32.gmra.mxu0 %v469
        %v520 = vpop.f32.mrf.mxu0
        %v521 = vadd.f32 %v492, %v520
        %522 = vmatmul.f32.gmra.mxu0 %v470
        %v523 = vpop.f32.mrf.mxu0
        %v524 = vadd.f32 %v492, %v523
        %525 = vmatmul.f32.gmra.mxu0 %v471
        %v526 = vpop.f32.mrf.mxu0
        %v527 = vadd.f32 %v492, %v526
        %528 = vmatmul.f32.gmra.mxu0 %v472
        %v529 = vpop.f32.mrf.mxu0
        %v530 = vadd.f32 %v492, %v529
        %531 = vmatmul.f32.gmra.mxu0 %v473
        %v532 = vpop.f32.mrf.mxu0
        %v533 = vadd.f32 %v492, %v532
        %534 = vdwg.mxu0
        %535 = vst [vmem:[%s218 + $0x40] sm:$0xff] %v512
        %536 = vst [vmem:[%s218 + $0x48] sm:$0xff] %v515
        %537 = vst [vmem:[%s218 + $0x50] sm:$0xff] %v518
        %538 = vst [vmem:[%s218 + $0x58] sm:$0xff] %v521
        %539 = vst [vmem:[%s218 + $0x60] sm:$0xff] %v524
        %540 = vst [vmem:[%s218 + $0x68] sm:$0xff] %v527
        %541 = vst [vmem:[%s218 + $0x70] sm:$0xff] %v530
        %542 = vst [vmem:[%s218 + $0x78] sm:$0xff] %v533
        %s543 = sand.u32 %s137, 1
        %s544 = scalar_lea.sflag [#allocation3], %s543
        %s545 = sand.u32 %s137, 1
        %s546 = smul.addr %s545, 128
        %s547 = scalar_lea.vmem [#allocation2], %s546
        // Predicated region
        $region41: #{tpu_custom_call.1} parent=39 // pred_check
          %p548 = pneg %p147
        $region42: #{tpu_custom_call.1} parent=39 // pred_check_branch
          %550 = sbr.rel (%p548) target = $region44
        $region43: #{tpu_custom_call.1} parent=39 // pred_region
          %s551 = smul.u32 16, %s19
          %553 = vsyncadd %s544, 0
          %s554 = smul.addr %s551, 8
          %s555 = scalar_lea.hbm %s5, %s554
          %s556 = sshll.u32 %s547, 4
          %s557 = int_to_ptr.vmem [resolvable:$true] %s556
          %s558 = sshll.u32 %s555, 4
          %s559 = int_to_ptr.hbm [resolvable:$true] %s558
          %564 = dma.vmem_to_hbm [thread:$0]  %s557, 2048, %s559, %s544, 128, 128, 8
        $region44: #{tpu_custom_call.1} parent=39 // pred_fallthru
          _
      $region40: #{tpu_custom_call.1} parent=5 // pred_fallthru
        _
      %p565 = scmp.le.s32.totalorder 2, %s14
      // Predicated region
      $region45: #{tpu_custom_call.1} parent=5 // pred_check
        %p566 = pneg %p565
      $region46: #{tpu_custom_call.1} parent=5 // pred_check_branch
        %568 = sbr.rel (%p566) target = $region48
      $region47: #{tpu_custom_call.1} parent=5 // pred_region
        %s569 = ssub.s32 %s14, 2
        // Predicated region
        $region49: #{tpu_custom_call.1} parent=47 // pred_check
          %p570 = pneg %p153
        $region50: #{tpu_custom_call.1} parent=47 // pred_check_branch
          %572 = sbr.rel (%p570) target = $region52
        $region51: #{tpu_custom_call.1} parent=47 // pred_region
          %s573 = sand.u32 %s138, 1
          %s574 = scalar_lea.sflag [#allocation3], %s573
          %s575 = sand.u32 %s138, 1
          %s576 = smul.addr %s575, 128
          %s577 = scalar_lea.vmem [#allocation2], %s576
          %579 = dma.done %s574, 2048
        $region52: #{tpu_custom_call.1} parent=47 // pred_fallthru
          _
      $region48: #{tpu_custom_call.1} parent=5 // pred_fallthru
        _
    $region6: #{tpu_custom_call.1} parent=1 // loop_footer
      %s18 = sadd.s32 1, %s14
    $region7: #{tpu_custom_call.1} parent=1 // loop_footer_branch
      %13 = sbr.rel target = $region3
    $region8: #{tpu_custom_call.1} parent=1 // loop_exit
      _
    %580 = vsyncpa [#allocation3], 1
    %s581 = scalar_lea.sflag [#allocation3], 1
    %582 = vsyncpa %s581, 1

</llo_original>
